<compile_context>
chip_gen: v5e
topology: v5e:2x2
jax: 0.10.0
libtpu: 0.0.40
codegen_flags: <defaults>
</compile_context>

<pallas_src>
import functools

import jax
import jax.numpy as jnp
from jax.experimental import pallas as pl
from jax.experimental.pallas import tpu as pltpu

# ---- hyperparameters the (json-driven) PyTorch module would read ----
ACTIVATE_FUNC = "relu"     # one of: relu / sigmoid / tanh
DROP_PROD     = 0.1        # dropout prob; identity at inference time
HIDDEN_SIZE   = 32
NUM_LAYERS    = 2          # => 1 extra hidden Linear after the first one
INPUT_SIZE    = 32
OUT_SIZE      = 4
BATCH         = 256        # example batch
LANE          = 128        # TPU lane width; hidden/output feature dims padded to this


def _round_up(n, m):
    return ((n + m - 1) // m) * m


def _num_tensorcores():
    """2 TensorCores per chip on v7x; 1 on v5e/v6e. Falls back to 1 if undetectable."""
    try:
        kind = jax.devices()[0].device_kind.lower()
        if "v7" in kind:
            return 2
    except Exception:
        pass
    return 1


def _activation(h, kind):
    if kind == "relu":
        return jnp.maximum(h, 0.0)
    elif kind == "sigmoid":
        return jax.nn.sigmoid(h)
    elif kind == "tanh":
        return jnp.tanh(h)
    raise ValueError(kind)


def mlp_kernel(x_ref, w0_ref, b0_ref, wh_ref, bh_ref, wo_ref, bo_ref, o_ref,
               *, num_hidden, act):
    # x arrives unpadded f32; cast to bf16 in-kernel (MXU input), accumulate in f32.
    x = x_ref[...].astype(jnp.bfloat16)
    h = jnp.dot(x, w0_ref[...], preferred_element_type=jnp.float32)
    h = _activation(h + b0_ref[...], act)
    # TODO(synk): training-mode dropout (pltpu.prng_seed/prng_random_bits + 1/(1-p)
    # scaling) not implemented; forward matches nn.Dropout in eval() mode (identity).

    # Hidden Linear layers (statically unrolled, weights stacked on leading axis).
    for i in range(num_hidden):
        h = jnp.dot(h.astype(wh_ref.dtype), wh_ref[i],
                    preferred_element_type=jnp.float32)
        h = _activation(h + bh_ref[i], act)

    # Output Linear (hidden -> padded 128 lanes), no activation; lane-dense store.
    out = jnp.dot(h.astype(wo_ref.dtype), wo_ref[...],
                  preferred_element_type=jnp.float32) + bo_ref[...]
    o_ref[...] = out.astype(o_ref.dtype)


def prepare_params(params):
    """One-time (outside the hot path) zero-padding to lane width + bf16 casts.

    Padding is exact: padded activation lanes meet zero weight rows downstream,
    and padded output lanes are sliced off after the kernel.
    """
    w0, b0, wh, bh, wo, bo = params          # unpadded f32 params (PyTorch layout^T)
    IN, H = w0.shape
    NH = wh.shape[0]
    O = wo.shape[1]
    H_p = _round_up(H, LANE)
    O_p = _round_up(O, LANE)

    w0_p = jnp.zeros((IN, H_p), jnp.bfloat16).at[:, :H].set(w0.astype(jnp.bfloat16))
    b0_p = jnp.zeros((1, H_p), jnp.float32).at[:, :H].set(b0)
    nh = max(NH, 1)                           # keep block dims >= 1 even if no hidden layers
    wh_p = jnp.zeros((nh, H_p, H_p), jnp.bfloat16)
    bh_p = jnp.zeros((nh, 1, H_p), jnp.float32)
    if NH > 0:
        wh_p = wh_p.at[:NH, :H, :H].set(wh.astype(jnp.bfloat16))
        bh_p = bh_p.at[:NH, :, :H].set(bh)
    wo_p = jnp.zeros((H_p, O_p), jnp.bfloat16).at[:H, :O].set(wo.astype(jnp.bfloat16))
    bo_p = jnp.zeros((1, O_p), jnp.float32).at[:, :O].set(bo)

    padded = (w0_p, b0_p, wh_p, bh_p, wo_p, bo_p)
    meta = (NH, O)
    return padded, meta


@functools.partial(jax.jit,
                   static_argnames=("num_hidden", "out_size", "act", "cores"))
def _mlp_forward_impl(x, w0, b0, wh, bh, wo, bo, *,
                      num_hidden, out_size, act, cores):
    B, IN = x.shape
    nh, H_p, _ = wh.shape
    O_p = wo.shape[1]

    # Single full-batch tile on single-TC chips (v5e/v6e); 2-way batch split on v7x.
    if cores > 1 and B >= 16:
        tile_b = _round_up(pl.cdiv(B, cores), 8)
    else:
        tile_b = _round_up(B, 8)
    grid = (pl.cdiv(B, tile_b),)

    flops = 2 * B * (IN * H_p + num_hidden * H_p * H_p + H_p * O_p)
    transcendentals = 0 if act == "relu" else B * H_p * (1 + num_hidden)
    bytes_accessed = (x.size * 4 + w0.size * 2 + wh.size * 2 + wo.size * 2
                      + (b0.size + bh.size + bo.size) * 4 + B * O_p * 4)

    kernel = functools.partial(mlp_kernel, num_hidden=num_hidden, act=act)

    out_p = pl.pallas_call(
        kernel,
        out_shape=jax.ShapeDtypeStruct((B, O_p), jnp.float32),
        grid_spec=pl.GridSpec(
            grid=grid,
            in_specs=[
                pl.BlockSpec((tile_b, IN),   lambda i: (i, 0)),     # x tile over batch (unpadded)
                pl.BlockSpec((IN, H_p),      lambda i: (0, 0)),     # W0 (VMEM-resident)
                pl.BlockSpec((1, H_p),       lambda i: (0, 0)),     # b0
                pl.BlockSpec((nh, H_p, H_p), lambda i: (0, 0, 0)),  # stacked hidden W
                pl.BlockSpec((nh, 1, H_p),   lambda i: (0, 0, 0)),  # stacked hidden b
                pl.BlockSpec((H_p, O_p),     lambda i: (0, 0)),     # W_out
                pl.BlockSpec((1, O_p),       lambda i: (0, 0)),     # b_out
            ],
            out_specs=pl.BlockSpec((tile_b, O_p), lambda i: (i, 0)),
        ),
        compiler_params=pltpu.CompilerParams(
            dimension_semantics=("parallel",)),
        cost_estimate=pl.CostEstimate(
            flops=int(flops),
            transcendentals=int(transcendentals),
            bytes_accessed=int(bytes_accessed)),
    )(x, w0, b0, wh, bh, wo, bo)

    return out_p[:, :out_size]                # drop padded output lanes


def mlp_forward(x, padded_params, meta, *, act=ACTIVATE_FUNC):
    num_hidden, out_size = meta
    return _mlp_forward_impl(x, *padded_params,
                             num_hidden=num_hidden, out_size=out_size,
                             act=act, cores=_num_tensorcores())


def init_params(key, input_size, hidden_size, num_layers, out_size):
    """Deterministic init mimicking nn.Linear's U(-1/sqrt(fan_in), 1/sqrt(fan_in)).
    Weights stored transposed vs PyTorch: shape (in, out)."""
    ks = jax.random.split(key, 2 * (num_layers + 1))
    num_hidden = num_layers - 1

    def lin(kw, kb, fan_in, fan_out):
        bound = 1.0 / jnp.sqrt(fan_in)
        w = jax.random.uniform(kw, (fan_in, fan_out), jnp.float32, -bound, bound)
        b = jax.random.uniform(kb, (1, fan_out), jnp.float32, -bound, bound)
        return w, b

    w0, b0 = lin(ks[0], ks[1], input_size, hidden_size)
    whs, bhs = [], []
    for i in range(num_hidden):
        w, b = lin(ks[2 + 2 * i], ks[3 + 2 * i], hidden_size, hidden_size)
        whs.append(w)
        bhs.append(b)
    wh = jnp.stack(whs, axis=0) if num_hidden > 0 else jnp.zeros(
        (0, hidden_size, hidden_size), jnp.float32)
    bh = jnp.stack(bhs, axis=0) if num_hidden > 0 else jnp.zeros(
        (0, 1, hidden_size), jnp.float32)
    wo, bo = lin(ks[-2], ks[-1], hidden_size, out_size)
    return w0, b0, wh, bh, wo, bo


def reference_forward(x, params, act=ACTIVATE_FUNC):
    """Pure-JAX reference mirroring the kernel's bf16-in / f32-accumulate path."""
    w0, b0, wh, bh, wo, bo = params

    def bdot(a, w):
        return jnp.dot(a.astype(jnp.bfloat16), w.astype(jnp.bfloat16),
                       preferred_element_type=jnp.float32)

    h = _activation(bdot(x, w0) + b0, act)
    for i in range(wh.shape[0]):
        h = _activation(bdot(h, wh[i]) + bh[i], act)
    return bdot(h, wo) + bo


if __name__ == "__main__":
    key = jax.random.PRNGKey(0)
    kx, kp = jax.random.split(key)

    x = jax.random.normal(kx, (BATCH, INPUT_SIZE), dtype=jnp.float32)
    params = init_params(kp, INPUT_SIZE, HIDDEN_SIZE, NUM_LAYERS, OUT_SIZE)

    # One-time padding / bf16 cast, hoisted out of the hot forward path.
    padded_params, meta = prepare_params(params)
    padded_params = jax.block_until_ready(padded_params)

    out = mlp_forward(x, padded_params, meta)
    out = jax.block_until_ready(out)

    ref = reference_forward(x, params)
    assert out.shape == (BATCH, OUT_SIZE)
    assert jnp.allclose(out, ref, atol=2e-3, rtol=2e-3), "mismatch vs reference"

    print("KERNEL_OK")
</pallas_src>

<mosaic_0001>
module attributes {stable_mosaic.version = 11 : i64} {
  func.func @mlp_kernel(%arg0: i32, %arg1: memref<256x32xf32, #tpu.memory_space<vmem>>, %arg2: memref<32x128xbf16, #tpu.memory_space<vmem>>, %arg3: memref<1x128xf32, #tpu.memory_space<vmem>>, %arg4: memref<1x128x128xbf16, #tpu.memory_space<vmem>>, %arg5: memref<1x1x128xf32, #tpu.memory_space<vmem>>, %arg6: memref<128x128xbf16, #tpu.memory_space<vmem>>, %arg7: memref<1x128xf32, #tpu.memory_space<vmem>>, %arg8: memref<256x128xf32, #tpu.memory_space<vmem>>) attributes {dimension_semantics = [#tpu.dimension_semantics<parallel>], iteration_bounds = array<i64: 1>, scalar_prefetch = 0 : i64, scratch_operands = 0 : i64, tpu.core_type = #tpu.core_type<tc>, window_params = [{transform_indices = @transform_0, window_bounds = array<i64: 256, 32>}, {pipeline_mode = #tpu.pipeline_mode<synchronous>, transform_indices = @transform_1, window_bounds = array<i64: 32, 128>}, {pipeline_mode = #tpu.pipeline_mode<synchronous>, transform_indices = @transform_2, window_bounds = array<i64: 1, 128>}, {pipeline_mode = #tpu.pipeline_mode<synchronous>, transform_indices = @transform_3, window_bounds = array<i64: 1, 128, 128>}, {pipeline_mode = #tpu.pipeline_mode<synchronous>, transform_indices = @transform_4, window_bounds = array<i64: 1, 1, 128>}, {pipeline_mode = #tpu.pipeline_mode<synchronous>, transform_indices = @transform_5, window_bounds = array<i64: 128, 128>}, {pipeline_mode = #tpu.pipeline_mode<synchronous>, transform_indices = @transform_6, window_bounds = array<i64: 1, 128>}, {transform_indices = @transform_7, window_bounds = array<i64: 256, 128>}]} {
    %c0 = arith.constant 0 : index
    %c0_0 = arith.constant 0 : index
    %0 = vector.load %arg1[%c0, %c0_0] : memref<256x32xf32, #tpu.memory_space<vmem>>, vector<256x32xf32>
    %1 = arith.truncf %0 : vector<256x32xf32> to vector<256x32xbf16>
    %c0_1 = arith.constant 0 : index
    %c0_2 = arith.constant 0 : index
    %2 = vector.load %arg2[%c0_1, %c0_2] : memref<32x128xbf16, #tpu.memory_space<vmem>>, vector<32x128xbf16>
    %cst = arith.constant dense<0.000000e+00> : vector<256x128xf32>
    %3 = tpu.matmul %1, %2, %cst {dimension_numbers = #tpu.dot_dimension_numbers<[1], [0], [0], [1], [0, 0, 1, 1], [], []>} : vector<256x32xbf16>, vector<32x128xbf16>, vector<256x128xf32> -> vector<256x128xf32>
    %c0_3 = arith.constant 0 : index
    %c0_4 = arith.constant 0 : index
    %4 = vector.load %arg3[%c0_3, %c0_4] : memref<1x128xf32, #tpu.memory_space<vmem>>, vector<1x128xf32>
    %5 = vector.broadcast %4 : vector<1x128xf32> to vector<256x128xf32>
    %6 = arith.addf %3, %5 : vector<256x128xf32>
    %cst_5 = arith.constant 0.000000e+00 : f32
    %7 = vector.broadcast %cst_5 : f32 to vector<256x128xf32>
    %8 = arith.maximumf %6, %7 : vector<256x128xf32>
    %9 = arith.truncf %8 : vector<256x128xf32> to vector<256x128xbf16>
    %c0_6 = arith.constant 0 : index
    %c0_7 = arith.constant 0 : index
    %c0_8 = arith.constant 0 : index
    %10 = vector.load %arg4[%c0_6, %c0_7, %c0_8] : memref<1x128x128xbf16, #tpu.memory_space<vmem>>, vector<1x128x128xbf16>
    %11 = vector.shape_cast %10 : vector<1x128x128xbf16> to vector<128x128xbf16>
    %cst_9 = arith.constant dense<0.000000e+00> : vector<256x128xf32>
    %12 = tpu.matmul %9, %11, %cst_9 {dimension_numbers = #tpu.dot_dimension_numbers<[1], [0], [0], [1], [0, 0, 1, 1], [], []>} : vector<256x128xbf16>, vector<128x128xbf16>, vector<256x128xf32> -> vector<256x128xf32>
    %c0_10 = arith.constant 0 : index
    %c0_11 = arith.constant 0 : index
    %c0_12 = arith.constant 0 : index
    %13 = vector.load %arg5[%c0_10, %c0_11, %c0_12] : memref<1x1x128xf32, #tpu.memory_space<vmem>>, vector<1x1x128xf32>
    %14 = vector.shape_cast %13 : vector<1x1x128xf32> to vector<1x128xf32>
    %15 = vector.broadcast %14 : vector<1x128xf32> to vector<256x128xf32>
    %16 = arith.addf %12, %15 : vector<256x128xf32>
    %cst_13 = arith.constant 0.000000e+00 : f32
    %17 = vector.broadcast %cst_13 : f32 to vector<256x128xf32>
    %18 = arith.maximumf %16, %17 : vector<256x128xf32>
    %19 = arith.truncf %18 : vector<256x128xf32> to vector<256x128xbf16>
    %c0_14 = arith.constant 0 : index
    %c0_15 = arith.constant 0 : index
    %20 = vector.load %arg6[%c0_14, %c0_15] : memref<128x128xbf16, #tpu.memory_space<vmem>>, vector<128x128xbf16>
    %cst_16 = arith.constant dense<0.000000e+00> : vector<256x128xf32>
    %21 = tpu.matmul %19, %20, %cst_16 {dimension_numbers = #tpu.dot_dimension_numbers<[1], [0], [0], [1], [0, 0, 1, 1], [], []>} : vector<256x128xbf16>, vector<128x128xbf16>, vector<256x128xf32> -> vector<256x128xf32>
    %c0_17 = arith.constant 0 : index
    %c0_18 = arith.constant 0 : index
    %22 = vector.load %arg7[%c0_17, %c0_18] : memref<1x128xf32, #tpu.memory_space<vmem>>, vector<1x128xf32>
    %23 = vector.broadcast %22 : vector<1x128xf32> to vector<256x128xf32>
    %24 = arith.addf %21, %23 : vector<256x128xf32>
    %c0_19 = arith.constant 0 : index
    %c0_20 = arith.constant 0 : index
    %25 = vector.load %arg8[%c0_19, %c0_20] : memref<256x128xf32, #tpu.memory_space<vmem>>, vector<256x128xf32>
    tpu.vector_store %arg8[%c0_19, %c0_20], %24 {strides = array<i32>} : memref<256x128xf32, #tpu.memory_space<vmem>>, vector<256x128xf32>,
    return
  }
  func.func @transform_0(%arg0: i32) -> (i32, i32) {
    %c0_i32 = arith.constant 0 : i32
    %c0_i32_0 = arith.constant 0 : i32
    return %arg0, %c0_i32 : i32, i32
  }
  func.func @transform_1(%arg0: i32) -> (i32, i32) {
    %c0_i32 = arith.constant 0 : i32
    %c0_i32_0 = arith.constant 0 : i32
    %c0_i32_1 = arith.constant 0 : i32
    return %c0_i32, %c0_i32_0 : i32, i32
  }
  func.func @transform_2(%arg0: i32) -> (i32, i32) {
    %c0_i32 = arith.constant 0 : i32
    %c0_i32_0 = arith.constant 0 : i32
    %c0_i32_1 = arith.constant 0 : i32
    return %c0_i32, %c0_i32_0 : i32, i32
  }
  func.func @transform_3(%arg0: i32) -> (i32, i32, i32) {
    %c0_i32 = arith.constant 0 : i32
    %c0_i32_0 = arith.constant 0 : i32
    %c0_i32_1 = arith.constant 0 : i32
    %c0_i32_2 = arith.constant 0 : i32
    return %c0_i32, %c0_i32_0, %c0_i32_1 : i32, i32, i32
  }
  func.func @transform_4(%arg0: i32) -> (i32, i32, i32) {
    %c0_i32 = arith.constant 0 : i32
    %c0_i32_0 = arith.constant 0 : i32
    %c0_i32_1 = arith.constant 0 : i32
    %c0_i32_2 = arith.constant 0 : i32
    return %c0_i32, %c0_i32_0, %c0_i32_1 : i32, i32, i32
  }
  func.func @transform_5(%arg0: i32) -> (i32, i32) {
    %c0_i32 = arith.constant 0 : i32
    %c0_i32_0 = arith.constant 0 : i32
    %c0_i32_1 = arith.constant 0 : i32
    return %c0_i32, %c0_i32_0 : i32, i32
  }
  func.func @transform_6(%arg0: i32) -> (i32, i32) {
    %c0_i32 = arith.constant 0 : i32
    %c0_i32_0 = arith.constant 0 : i32
    %c0_i32_1 = arith.constant 0 : i32
    return %c0_i32, %c0_i32_0 : i32, i32
  }
  func.func @transform_7(%arg0: i32) -> (i32, i32) {
    %c0_i32 = arith.constant 0 : i32
    %c0_i32_0 = arith.constant 0 : i32
    return %arg0, %c0_i32 : i32, i32
  }
}

</mosaic_0001>

<llo_original>
// kernel: _mlp_forward_impl.1
$region0: #{_mlp_forward_impl.1}
  #allocation0 [shape = 'u32[]', space=smem, size = 0x4, offset = 0x4, fixed_abs, tag = 'smem constant byte address 0x4 - core index']
  #allocation1 [shape = 'u32[72,128]{1,0:T(1,128)}', space=vmem, size = 0x9000, scoped, tag = 'internal scratch']
  %s0 = inlined_call_operand.vmem [shape: f32[256,32], index: 0, kind: input, shape index: {}]
  %s1 = inlined_call_operand.vmem [shape: bf16[32,128], index: 1, kind: input, shape index: {}]
  %s2 = inlined_call_operand.vmem [shape: f32[1,128], index: 2, kind: input, shape index: {}]
  %s3 = inlined_call_operand.vmem [shape: bf16[1,128,128], index: 3, kind: input, shape index: {}]
  %s4 = inlined_call_operand.vmem [shape: f32[1,1,128], index: 4, kind: input, shape index: {}]
  %s5 = inlined_call_operand.vmem [shape: bf16[128,128], index: 5, kind: input, shape index: {}]
  %s6 = inlined_call_operand.vmem [shape: f32[1,128], index: 6, kind: input, shape index: {}]
  %s7 = inlined_call_operand.vmem [shape: f32[256,128], index: 7, kind: output, shape index: {}]
  %s8 = sld [smem:[#allocation0]]
  $region38: #{_mlp_forward_impl.1} parent=0
    _
  %s10 = ssub.s32 1, %s8
  %s11 = scalar_select 0, %s10, %s8
  // Predicated region
  $region2: #{_mlp_forward_impl.1} parent=0 // pred_check
    _
  $region3: #{_mlp_forward_impl.1} parent=0 // pred_check_branch
    %13 = sbr.rel (0) target = $region5
  $region4: #{_mlp_forward_impl.1} parent=0 // pred_region
    _
  $region5: #{_mlp_forward_impl.1} parent=0 // pred_fallthru
    _
  // Predicated region
  $region6: #{_mlp_forward_impl.1} parent=0 // pred_check
    _
  $region7: #{_mlp_forward_impl.1} parent=0 // pred_check_branch
    %15 = sbr.rel (0) target = $region9
  $region8: #{_mlp_forward_impl.1} parent=0 // pred_region
    _
  $region9: #{_mlp_forward_impl.1} parent=0 // pred_fallthru
    _
  // Predicated region
  $region10: #{_mlp_forward_impl.1} parent=0 // pred_check
    _
  $region11: #{_mlp_forward_impl.1} parent=0 // pred_check_branch
    %17 = sbr.rel (0) target = $region13
  $region12: #{_mlp_forward_impl.1} parent=0 // pred_region
    _
  $region13: #{_mlp_forward_impl.1} parent=0 // pred_fallthru
    _
  // Predicated region
  $region14: #{_mlp_forward_impl.1} parent=0 // pred_check
    _
  $region15: #{_mlp_forward_impl.1} parent=0 // pred_check_branch
    %19 = sbr.rel (0) target = $region17
  $region16: #{_mlp_forward_impl.1} parent=0 // pred_region
    _
  $region17: #{_mlp_forward_impl.1} parent=0 // pred_fallthru
    _
  // Predicated region
  $region18: #{_mlp_forward_impl.1} parent=0 // pred_check
    _
  $region19: #{_mlp_forward_impl.1} parent=0 // pred_check_branch
    %21 = sbr.rel (0) target = $region21
  $region20: #{_mlp_forward_impl.1} parent=0 // pred_region
    _
  $region21: #{_mlp_forward_impl.1} parent=0 // pred_fallthru
    _
  // Predicated region
  $region22: #{_mlp_forward_impl.1} parent=0 // pred_check
    _
  $region23: #{_mlp_forward_impl.1} parent=0 // pred_check_branch
    %23 = sbr.rel (0) target = $region25
  $region24: #{_mlp_forward_impl.1} parent=0 // pred_region
    _
  $region25: #{_mlp_forward_impl.1} parent=0 // pred_fallthru
    _
  // Predicated region
  $region26: #{_mlp_forward_impl.1} parent=0 // pred_check
    _
  $region27: #{_mlp_forward_impl.1} parent=0 // pred_check_branch
    %25 = sbr.rel (0) target = $region29
  $region28: #{_mlp_forward_impl.1} parent=0 // pred_region
    _
  $region29: #{_mlp_forward_impl.1} parent=0 // pred_fallthru
    _
  %v27 = vld [vmem:[%s0] sm:$0xff]
  %v28 = vld [vmem:[%s0 + $0x8] sm:$0xff]
  %v29 = vld [vmem:[%s0 + $0x10] sm:$0xff]
  %v30 = vld [vmem:[%s0 + $0x18] sm:$0xff]
  %v31 = vld [vmem:[%s0 + $0x20] sm:$0xff]
  %v32 = vld [vmem:[%s0 + $0x28] sm:$0xff]
  %v33 = vld [vmem:[%s0 + $0x30] sm:$0xff]
  %v34 = vld [vmem:[%s0 + $0x38] sm:$0xff]
  %v35 = vld [vmem:[%s0 + $0x40] sm:$0xff]
  %v36 = vld [vmem:[%s0 + $0x48] sm:$0xff]
  %v37 = vld [vmem:[%s0 + $0x50] sm:$0xff]
  %v38 = vld [vmem:[%s0 + $0x58] sm:$0xff]
  %v39 = vld [vmem:[%s0 + $0x60] sm:$0xff]
  %v40 = vld [vmem:[%s0 + $0x68] sm:$0xff]
  %v41 = vld [vmem:[%s0 + $0x70] sm:$0xff]
  %v42 = vld [vmem:[%s0 + $0x78] sm:$0xff]
  %v43 = vld [vmem:[%s0 + $0x80] sm:$0xff]
  %v44 = vld [vmem:[%s0 + $0x88] sm:$0xff]
  %v45 = vld [vmem:[%s0 + $0x90] sm:$0xff]
  %v46 = vld [vmem:[%s0 + $0x98] sm:$0xff]
  %v47 = vld [vmem:[%s0 + $0xa0] sm:$0xff]
  %v48 = vld [vmem:[%s0 + $0xa8] sm:$0xff]
  %v49 = vld [vmem:[%s0 + $0xb0] sm:$0xff]
  %v50 = vld [vmem:[%s0 + $0xb8] sm:$0xff]
  %v51 = vld [vmem:[%s0 + $0xc0] sm:$0xff]
  %v52 = vld [vmem:[%s0 + $0xc8] sm:$0xff]
  %v53 = vld [vmem:[%s0 + $0xd0] sm:$0xff]
  %v54 = vld [vmem:[%s0 + $0xd8] sm:$0xff]
  %v55 = vld [vmem:[%s0 + $0xe0] sm:$0xff]
  %v56 = vld [vmem:[%s0 + $0xe8] sm:$0xff]
  %v57 = vld [vmem:[%s0 + $0xf0] sm:$0xff]
  %v58 = vld [vmem:[%s0 + $0xf8] sm:$0xff]
  %v59 = vpack.c.bf16 %v28, %v27
  %v60 = vpack.c.bf16 %v30, %v29
  %v61 = vpack.c.bf16 %v32, %v31
  %v62 = vpack.c.bf16 %v34, %v33
  %v63 = vpack.c.bf16 %v36, %v35
  %v64 = vpack.c.bf16 %v38, %v37
  %v65 = vpack.c.bf16 %v40, %v39
  %v66 = vpack.c.bf16 %v42, %v41
  %v67 = vpack.c.bf16 %v44, %v43
  %v68 = vpack.c.bf16 %v46, %v45
  %v69 = vpack.c.bf16 %v48, %v47
  %v70 = vpack.c.bf16 %v50, %v49
  %v71 = vpack.c.bf16 %v52, %v51
  %v72 = vpack.c.bf16 %v54, %v53
  %v73 = vpack.c.bf16 %v56, %v55
  %v74 = vpack.c.bf16 %v58, %v57
  %v75 = vld [vmem:[%s1] sm:$0xf]
  %v76 = vld [vmem:[%s1 + $0x4] sm:$0xf]
  %v77 = vld [vmem:[%s1 + $0x8] sm:$0xf]
  %v78 = vld [vmem:[%s1 + $0xc] sm:$0xf]
  %v79 = vld [vmem:[%s2] sm:$0x1]
  %v81 = vperm.slane %v79, 0
  %v87 = vunpack.c.l.b16 %v75
  %v88 = vunpack.c.l.b16 %v76
  %v89 = vunpack.c.l.b16 %v77
  %v90 = vunpack.c.l.b16 %v78
  %v91 = vpack.c.b16 %v88, %v87
  %v92 = vpack.c.b16 %v90, %v89
  %vm95 = vcmask 261120
  %v97 = vsel %vm95, %v59, 0
  %v100 = vsel %vm95, %v60, 0
  %v103 = vsel %vm95, %v61, 0
  %v106 = vsel %vm95, %v62, 0
  %v109 = vsel %vm95, %v63, 0
  %v112 = vsel %vm95, %v64, 0
  %v115 = vsel %vm95, %v65, 0
  %v118 = vsel %vm95, %v66, 0
  %v121 = vsel %vm95, %v67, 0
  %v124 = vsel %vm95, %v68, 0
  %v127 = vsel %vm95, %v69, 0
  %v130 = vsel %vm95, %v70, 0
  %v133 = vsel %vm95, %v71, 0
  %v136 = vsel %vm95, %v72, 0
  %v139 = vsel %vm95, %v73, 0
  %v142 = vsel %vm95, %v74, 0
  %144 = vmatpush.bf16.msra.mxu0 0
  %145 = vmatpush.bf16.msra.mxu0 0
  %146 = vmatpush.bf16.msra.mxu0 0
  %147 = vmatpush.bf16.msra.mxu0 0
  %148 = vmatpush.bf16.msra.mxu0 0
  %149 = vmatpush.bf16.msra.mxu0 0
  %150 = vmatpush.bf16.msra.mxu0 %v92
  %151 = vmatpush.bf16.msra.mxu0 %v91
  %152 = vmatmul.bf16.gmra.mxu0 %v97
  %v153 = vpop.f32.mrf.mxu0
  %v154 = vadd.f32 %v81, %v153
  %v155 = vpop.f32.mrf.mxu0
  %v156 = vadd.f32 %v81, %v155
  %157 = vmatmul.bf16.gmra.mxu0 %v100
  %v158 = vpop.f32.mrf.mxu0
  %v159 = vadd.f32 %v81, %v158
  %v160 = vpop.f32.mrf.mxu0
  %v161 = vadd.f32 %v81, %v160
  %162 = vmatmul.bf16.gmra.mxu0 %v103
  %v163 = vpop.f32.mrf.mxu0
  %v164 = vadd.f32 %v81, %v163
  %v165 = vpop.f32.mrf.mxu0
  %v166 = vadd.f32 %v81, %v165
  %167 = vmatmul.bf16.gmra.mxu0 %v106
  %v168 = vpop.f32.mrf.mxu0
  %v169 = vadd.f32 %v81, %v168
  %v170 = vpop.f32.mrf.mxu0
  %v171 = vadd.f32 %v81, %v170
  %172 = vmatmul.bf16.gmra.mxu0 %v109
  %v173 = vpop.f32.mrf.mxu0
  %v174 = vadd.f32 %v81, %v173
  %v175 = vpop.f32.mrf.mxu0
  %v176 = vadd.f32 %v81, %v175
  %177 = vmatmul.bf16.gmra.mxu0 %v112
  %v178 = vpop.f32.mrf.mxu0
  %v179 = vadd.f32 %v81, %v178
  %v180 = vpop.f32.mrf.mxu0
  %v181 = vadd.f32 %v81, %v180
  %182 = vmatmul.bf16.gmra.mxu0 %v115
  %v183 = vpop.f32.mrf.mxu0
  %v184 = vadd.f32 %v81, %v183
  %v185 = vpop.f32.mrf.mxu0
  %v186 = vadd.f32 %v81, %v185
  %187 = vmatmul.bf16.gmra.mxu0 %v118
  %v188 = vpop.f32.mrf.mxu0
  %v189 = vadd.f32 %v81, %v188
  %v190 = vpop.f32.mrf.mxu0
  %v191 = vadd.f32 %v81, %v190
  %192 = vmatmul.bf16.gmra.mxu0 %v121
  %v193 = vpop.f32.mrf.mxu0
  %v194 = vadd.f32 %v81, %v193
  %v195 = vpop.f32.mrf.mxu0
  %v196 = vadd.f32 %v81, %v195
  %197 = vmatmul.bf16.gmra.mxu0 %v124
  %v198 = vpop.f32.mrf.mxu0
  %v199 = vadd.f32 %v81, %v198
  %v200 = vpop.f32.mrf.mxu0
  %v201 = vadd.f32 %v81, %v200
  %202 = vmatmul.bf16.gmra.mxu0 %v127
  %v203 = vpop.f32.mrf.mxu0
  %v204 = vadd.f32 %v81, %v203
  %v205 = vpop.f32.mrf.mxu0
  %v206 = vadd.f32 %v81, %v205
  %207 = vmatmul.bf16.gmra.mxu0 %v130
  %v208 = vpop.f32.mrf.mxu0
  %v209 = vadd.f32 %v81, %v208
  %v210 = vpop.f32.mrf.mxu0
  %v211 = vadd.f32 %v81, %v210
  %212 = vmatmul.bf16.gmra.mxu0 %v133
  %v213 = vpop.f32.mrf.mxu0
  %v214 = vadd.f32 %v81, %v213
  %v215 = vpop.f32.mrf.mxu0
  %v216 = vadd.f32 %v81, %v215
  %217 = vmatmul.bf16.gmra.mxu0 %v136
  %v218 = vpop.f32.mrf.mxu0
  %v219 = vadd.f32 %v81, %v218
  %v220 = vpop.f32.mrf.mxu0
  %v221 = vadd.f32 %v81, %v220
  %222 = vmatmul.bf16.gmra.mxu0 %v139
  %v223 = vpop.f32.mrf.mxu0
  %v224 = vadd.f32 %v81, %v223
  %v225 = vpop.f32.mrf.mxu0
  %v226 = vadd.f32 %v81, %v225
  %227 = vmatmul.bf16.gmra.mxu0 %v142
  %v228 = vpop.f32.mrf.mxu0
  %v229 = vadd.f32 %v81, %v228
  %v230 = vpop.f32.mrf.mxu0
  %v231 = vadd.f32 %v81, %v230
  %232 = vdwg.mxu0
  %v233 = vmax.f32 %v154, 0.0
  %v234 = vmax.f32 %v156, 0.0
  %v235 = vmax.f32 %v159, 0.0
  %v236 = vmax.f32 %v161, 0.0
  %v237 = vmax.f32 %v164, 0.0
  %v238 = vmax.f32 %v166, 0.0
  %v239 = vmax.f32 %v169, 0.0
  %v240 = vmax.f32 %v171, 0.0
  %v241 = vmax.f32 %v174, 0.0
  %v242 = vmax.f32 %v176, 0.0
  %v243 = vmax.f32 %v179, 0.0
  %v244 = vmax.f32 %v181, 0.0
  %v245 = vmax.f32 %v184, 0.0
  %v246 = vmax.f32 %v186, 0.0
  %v247 = vmax.f32 %v189, 0.0
  %v248 = vmax.f32 %v191, 0.0
  %v249 = vmax.f32 %v194, 0.0
  %v250 = vmax.f32 %v196, 0.0
  %v251 = vmax.f32 %v199, 0.0
  %v252 = vmax.f32 %v201, 0.0
  %v253 = vmax.f32 %v204, 0.0
  %v254 = vmax.f32 %v206, 0.0
  %v255 = vmax.f32 %v209, 0.0
  %v256 = vmax.f32 %v211, 0.0
  %v257 = vmax.f32 %v214, 0.0
  %v258 = vmax.f32 %v216, 0.0
  %v259 = vmax.f32 %v219, 0.0
  %v260 = vmax.f32 %v221, 0.0
  %v261 = vmax.f32 %v224, 0.0
  %v262 = vmax.f32 %v226, 0.0
  %v263 = vmax.f32 %v229, 0.0
  %v264 = vmax.f32 %v231, 0.0
  %v265 = vpack.c.bf16 %v234, %v233
  %v266 = vpack.c.bf16 %v236, %v235
  %v267 = vpack.c.bf16 %v238, %v237
  %v268 = vpack.c.bf16 %v240, %v239
  %v269 = vpack.c.bf16 %v242, %v241
  %v270 = vpack.c.bf16 %v244, %v243
  %v271 = vpack.c.bf16 %v246, %v245
  %v272 = vpack.c.bf16 %v248, %v247
  %v273 = vpack.c.bf16 %v250, %v249
  %v274 = vpack.c.bf16 %v252, %v251
  %v275 = vpack.c.bf16 %v254, %v253
  %v276 = vpack.c.bf16 %v256, %v255
  %v277 = vpack.c.bf16 %v258, %v257
  %v278 = vpack.c.bf16 %v260, %v259
  %v279 = vpack.c.bf16 %v262, %v261
  %v280 = vpack.c.bf16 %v264, %v263
  %v281 = vld [vmem:[%s3] sm:$0xf]
  %v282 = vld [vmem:[%s3 + $0x4] sm:$0xf]
  %v283 = vld [vmem:[%s3 + $0x8] sm:$0xf]
  %v284 = vld [vmem:[%s3 + $0xc] sm:$0xf]
  %v285 = vld [vmem:[%s3 + $0x10] sm:$0xf]
  %v286 = vld [vmem:[%s3 + $0x14] sm:$0xf]
  %v287 = vld [vmem:[%s3 + $0x18] sm:$0xf]
  %v288 = vld [vmem:[%s3 + $0x1c] sm:$0xf]
  %v289 = vld [vmem:[%s3 + $0x20] sm:$0xf]
  %v290 = vld [vmem:[%s3 + $0x24] sm:$0xf]
  %v291 = vld [vmem:[%s3 + $0x28] sm:$0xf]
  %v292 = vld [vmem:[%s3 + $0x2c] sm:$0xf]
  %v293 = vld [vmem:[%s3 + $0x30] sm:$0xf]
  %v294 = vld [vmem:[%s3 + $0x34] sm:$0xf]
  %v295 = vld [vmem:[%s3 + $0x38] sm:$0xf]
  %v296 = vld [vmem:[%s3 + $0x3c] sm:$0xf]
  %v297 = vld [vmem:[%s4] sm:$0x1]
  %v299 = vperm.slane %v297, 0
  %v317 = vunpack.c.l.b16 %v281
  %v318 = vunpack.c.l.b16 %v282
  %v319 = vunpack.c.l.b16 %v283
  %v320 = vunpack.c.l.b16 %v284
  %v321 = vunpack.c.l.b16 %v285
  %v322 = vunpack.c.l.b16 %v286
  %v323 = vunpack.c.l.b16 %v287
  %v324 = vunpack.c.l.b16 %v288
  %v325 = vunpack.c.l.b16 %v289
  %v326 = vunpack.c.l.b16 %v290
  %v327 = vunpack.c.l.b16 %v291
  %v328 = vunpack.c.l.b16 %v292
  %v329 = vunpack.c.l.b16 %v293
  %v330 = vunpack.c.l.b16 %v294
  %v331 = vunpack.c.l.b16 %v295
  %v332 = vunpack.c.l.b16 %v296
  %v333 = vpack.c.b16 %v318, %v317
  %v334 = vpack.c.b16 %v320, %v319
  %v335 = vpack.c.b16 %v322, %v321
  %v336 = vpack.c.b16 %v324, %v323
  %v337 = vpack.c.b16 %v326, %v325
  %v338 = vpack.c.b16 %v328, %v327
  %v339 = vpack.c.b16 %v330, %v329
  %v340 = vpack.c.b16 %v332, %v331
  %349 = vmatpush.bf16.msra.mxu0 %v340
  %350 = vmatpush.bf16.msra.mxu0 %v339
  %351 = vmatpush.bf16.msra.mxu0 %v338
  %352 = vmatpush.bf16.msra.mxu0 %v337
  %353 = vmatpush.bf16.msra.mxu0 %v336
  %354 = vmatpush.bf16.msra.mxu0 %v335
  %355 = vmatpush.bf16.msra.mxu0 %v334
  %356 = vmatpush.bf16.msra.mxu0 %v333
  %357 = vmatmul.bf16.gmra.mxu0 %v265
  %v358 = vpop.f32.mrf.mxu0
  %v359 = vadd.f32 %v299, %v358
  %v360 = vpop.f32.mrf.mxu0
  %v361 = vadd.f32 %v299, %v360
  %362 = vmatmul.bf16.gmra.mxu0 %v266
  %v363 = vpop.f32.mrf.mxu0
  %v364 = vadd.f32 %v299, %v363
  %v365 = vpop.f32.mrf.mxu0
  %v366 = vadd.f32 %v299, %v365
  %367 = vmatmul.bf16.gmra.mxu0 %v267
  %v368 = vpop.f32.mrf.mxu0
  %v369 = vadd.f32 %v299, %v368
  %v370 = vpop.f32.mrf.mxu0
  %v371 = vadd.f32 %v299, %v370
  %372 = vmatmul.bf16.gmra.mxu0 %v268
  %v373 = vpop.f32.mrf.mxu0
  %v374 = vadd.f32 %v299, %v373
  %v375 = vpop.f32.mrf.mxu0
  %v376 = vadd.f32 %v299, %v375
  %377 = vmatmul.bf16.gmra.mxu0 %v269
  %v378 = vpop.f32.mrf.mxu0
  %v379 = vadd.f32 %v299, %v378
  %v380 = vpop.f32.mrf.mxu0
  %v381 = vadd.f32 %v299, %v380
  %382 = vmatmul.bf16.gmra.mxu0 %v270
  %v383 = vpop.f32.mrf.mxu0
  %v384 = vadd.f32 %v299, %v383
  %v385 = vpop.f32.mrf.mxu0
  %v386 = vadd.f32 %v299, %v385
  %387 = vmatmul.bf16.gmra.mxu0 %v271
  %v388 = vpop.f32.mrf.mxu0
  %v389 = vadd.f32 %v299, %v388
  %v390 = vpop.f32.mrf.mxu0
  %v391 = vadd.f32 %v299, %v390
  %392 = vmatmul.bf16.gmra.mxu0 %v272
  %v393 = vpop.f32.mrf.mxu0
  %v394 = vadd.f32 %v299, %v393
  %v395 = vpop.f32.mrf.mxu0
  %v396 = vadd.f32 %v299, %v395
  %397 = vmatmul.bf16.gmra.mxu0 %v273
  %v398 = vpop.f32.mrf.mxu0
  %v399 = vadd.f32 %v299, %v398
  %v400 = vpop.f32.mrf.mxu0
  %v401 = vadd.f32 %v299, %v400
  %402 = vmatmul.bf16.gmra.mxu0 %v274
  %v403 = vpop.f32.mrf.mxu0
  %v404 = vadd.f32 %v299, %v403
  %v405 = vpop.f32.mrf.mxu0
  %v406 = vadd.f32 %v299, %v405
  %407 = vmatmul.bf16.gmra.mxu0 %v275
  %v408 = vpop.f32.mrf.mxu0
  %v409 = vadd.f32 %v299, %v408
  %v410 = vpop.f32.mrf.mxu0
  %v411 = vadd.f32 %v299, %v410
  %412 = vmatmul.bf16.gmra.mxu0 %v276
  %v413 = vpop.f32.mrf.mxu0
  %v414 = vadd.f32 %v299, %v413
  %v415 = vpop.f32.mrf.mxu0
  %v416 = vadd.f32 %v299, %v415
  %417 = vmatmul.bf16.gmra.mxu0 %v277
  %v418 = vpop.f32.mrf.mxu0
  %v419 = vadd.f32 %v299, %v418
  %v420 = vpop.f32.mrf.mxu0
  %v421 = vadd.f32 %v299, %v420
  %422 = vmatmul.bf16.gmra.mxu0 %v278
  %v423 = vpop.f32.mrf.mxu0
  %v424 = vadd.f32 %v299, %v423
  %v425 = vpop.f32.mrf.mxu0
  %v426 = vadd.f32 %v299, %v425
  %427 = vmatmul.bf16.gmra.mxu0 %v279
  %v428 = vpop.f32.mrf.mxu0
  %v429 = vadd.f32 %v299, %v428
  %v430 = vpop.f32.mrf.mxu0
  %v431 = vadd.f32 %v299, %v430
  %432 = vmatmul.bf16.gmra.mxu0 %v280
  %v433 = vpop.f32.mrf.mxu0
  %v434 = vadd.f32 %v299, %v433
  %v435 = vpop.f32.mrf.mxu0
  %v436 = vadd.f32 %v299, %v435
  %437 = vdwg.mxu0
  %v438 = vmax.f32 %v359, 0.0
  %v439 = vmax.f32 %v361, 0.0
  %v440 = vmax.f32 %v364, 0.0
  %v441 = vmax.f32 %v366, 0.0
  %v442 = vmax.f32 %v369, 0.0
  %v443 = vmax.f32 %v371, 0.0
  %v444 = vmax.f32 %v374, 0.0
  %v445 = vmax.f32 %v376, 0.0
  %v446 = vmax.f32 %v379, 0.0
  %v447 = vmax.f32 %v381, 0.0
  %v448 = vmax.f32 %v384, 0.0
  %v449 = vmax.f32 %v386, 0.0
  %v450 = vmax.f32 %v389, 0.0
  %v451 = vmax.f32 %v391, 0.0
  %v452 = vmax.f32 %v394, 0.0
  %v453 = vmax.f32 %v396, 0.0
  %v454 = vmax.f32 %v399, 0.0
  %v455 = vmax.f32 %v401, 0.0
  %v456 = vmax.f32 %v404, 0.0
  %v457 = vmax.f32 %v406, 0.0
  %v458 = vmax.f32 %v409, 0.0
  %v459 = vmax.f32 %v411, 0.0
  %v460 = vmax.f32 %v414, 0.0
  %v461 = vmax.f32 %v416, 0.0
  %v462 = vmax.f32 %v419, 0.0
  %v463 = vmax.f32 %v421, 0.0
  %v464 = vmax.f32 %v424, 0.0
  %v465 = vmax.f32 %v426, 0.0
  %v466 = vmax.f32 %v429, 0.0
  %v467 = vmax.f32 %v431, 0.0
  %v468 = vmax.f32 %v434, 0.0
  %v469 = vmax.f32 %v436, 0.0
  %v470 = vpack.c.bf16 %v439, %v438
  %v471 = vpack.c.bf16 %v441, %v440
  %v472 = vpack.c.bf16 %v443, %v442
  %v473 = vpack.c.bf16 %v445, %v444
  %v474 = vpack.c.bf16 %v447, %v446
  %v475 = vpack.c.bf16 %v449, %v448
  %v476 = vpack.c.bf16 %v451, %v450
  %v477 = vpack.c.bf16 %v453, %v452
  %v478 = vpack.c.bf16 %v455, %v454
  %v479 = vpack.c.bf16 %v457, %v456
  %v480 = vpack.c.bf16 %v459, %v458
  %v481 = vpack.c.bf16 %v461, %v460
  %v482 = vpack.c.bf16 %v463, %v462
  %v483 = vpack.c.bf16 %v465, %v464
  %v484 = vpack.c.bf16 %v467, %v466
  %v485 = vpack.c.bf16 %v469, %v468
  %v486 = vld [vmem:[%s5] sm:$0xf]
  %v487 = vld [vmem:[%s5 + $0x4] sm:$0xf]
  %v488 = vld [vmem:[%s5 + $0x8] sm:$0xf]
  %v489 = vld [vmem:[%s5 + $0xc] sm:$0xf]
  %v490 = vld [vmem:[%s5 + $0x10] sm:$0xf]
  %v491 = vld [vmem:[%s5 + $0x14] sm:$0xf]
  %v492 = vld [vmem:[%s5 + $0x18] sm:$0xf]
  %v493 = vld [vmem:[%s5 + $0x1c] sm:$0xf]
  %v494 = vld [vmem:[%s5 + $0x20] sm:$0xf]
  %v495 = vld [vmem:[%s5 + $0x24] sm:$0xf]
  %v496 = vld [vmem:[%s5 + $0x28] sm:$0xf]
  %v497 = vld [vmem:[%s5 + $0x2c] sm:$0xf]
  %v498 = vld [vmem:[%s5 + $0x30] sm:$0xf]
  %v499 = vld [vmem:[%s5 + $0x34] sm:$0xf]
  %v500 = vld [vmem:[%s5 + $0x38] sm:$0xf]
  %v501 = vld [vmem:[%s5 + $0x3c] sm:$0xf]
  %v502 = vld [vmem:[%s6] sm:$0x1]
  %v504 = vperm.slane %v502, 0
  %v522 = vunpack.c.l.b16 %v486
  %v523 = vunpack.c.l.b16 %v487
  %v524 = vunpack.c.l.b16 %v488
  %v525 = vunpack.c.l.b16 %v489
  %v526 = vunpack.c.l.b16 %v490
  %v527 = vunpack.c.l.b16 %v491
  %v528 = vunpack.c.l.b16 %v492
  %v529 = vunpack.c.l.b16 %v493
  %v530 = vunpack.c.l.b16 %v494
  %v531 = vunpack.c.l.b16 %v495
  %v532 = vunpack.c.l.b16 %v496
  %v533 = vunpack.c.l.b16 %v497
  %v534 = vunpack.c.l.b16 %v498
  %v535 = vunpack.c.l.b16 %v499
  %v536 = vunpack.c.l.b16 %v500
  %v537 = vunpack.c.l.b16 %v501
  %v538 = vpack.c.b16 %v523, %v522
  %v539 = vpack.c.b16 %v525, %v524
  %v540 = vpack.c.b16 %v527, %v526
  %v541 = vpack.c.b16 %v529, %v528
  %v542 = vpack.c.b16 %v531, %v530
  %v543 = vpack.c.b16 %v533, %v532
  %v544 = vpack.c.b16 %v535, %v534
  %v545 = vpack.c.b16 %v537, %v536
  %554 = vmatpush.bf16.msra.mxu0 %v545
  %555 = vmatpush.bf16.msra.mxu0 %v544
  %556 = vmatpush.bf16.msra.mxu0 %v543
  %557 = vmatpush.bf16.msra.mxu0 %v542
  %558 = vmatpush.bf16.msra.mxu0 %v541
  %559 = vmatpush.bf16.msra.mxu0 %v540
  %560 = vmatpush.bf16.msra.mxu0 %v539
  %561 = vmatpush.bf16.msra.mxu0 %v538
  %562 = vmatmul.bf16.gmra.mxu0 %v470
  %v563 = vpop.f32.mrf.mxu0
  %v564 = vadd.f32 %v504, %v563
  %v565 = vpop.f32.mrf.mxu0
  %v566 = vadd.f32 %v504, %v565
  %567 = vmatmul.bf16.gmra.mxu0 %v471
  %v568 = vpop.f32.mrf.mxu0
  %v569 = vadd.f32 %v504, %v568
  %v570 = vpop.f32.mrf.mxu0
  %v571 = vadd.f32 %v504, %v570
  %572 = vmatmul.bf16.gmra.mxu0 %v472
  %v573 = vpop.f32.mrf.mxu0
  %v574 = vadd.f32 %v504, %v573
  %v575 = vpop.f32.mrf.mxu0
  %v576 = vadd.f32 %v504, %v575
  %577 = vmatmul.bf16.gmra.mxu0 %v473
  %v578 = vpop.f32.mrf.mxu0
  %v579 = vadd.f32 %v504, %v578
  %v580 = vpop.f32.mrf.mxu0
  %v581 = vadd.f32 %v504, %v580
  %582 = vmatmul.bf16.gmra.mxu0 %v474
  %v583 = vpop.f32.mrf.mxu0
  %v584 = vadd.f32 %v504, %v583
  %v585 = vpop.f32.mrf.mxu0
  %v586 = vadd.f32 %v504, %v585
  %587 = vmatmul.bf16.gmra.mxu0 %v475
  %v588 = vpop.f32.mrf.mxu0
  %v589 = vadd.f32 %v504, %v588
  %v590 = vpop.f32.mrf.mxu0
  %v591 = vadd.f32 %v504, %v590
  %592 = vmatmul.bf16.gmra.mxu0 %v476
  %v593 = vpop.f32.mrf.mxu0
  %v594 = vadd.f32 %v504, %v593
  %v595 = vpop.f32.mrf.mxu0
  %v596 = vadd.f32 %v504, %v595
  %597 = vmatmul.bf16.gmra.mxu0 %v477
  %v598 = vpop.f32.mrf.mxu0
  %v599 = vadd.f32 %v504, %v598
  %v600 = vpop.f32.mrf.mxu0
  %v601 = vadd.f32 %v504, %v600
  %602 = vmatmul.bf16.gmra.mxu0 %v478
  %v603 = vpop.f32.mrf.mxu0
  %v604 = vadd.f32 %v504, %v603
  %v605 = vpop.f32.mrf.mxu0
  %v606 = vadd.f32 %v504, %v605
  %607 = vmatmul.bf16.gmra.mxu0 %v479
  %v608 = vpop.f32.mrf.mxu0
  %v609 = vadd.f32 %v504, %v608
  %v610 = vpop.f32.mrf.mxu0
  %v611 = vadd.f32 %v504, %v610
  %612 = vmatmul.bf16.gmra.mxu0 %v480
  %v613 = vpop.f32.mrf.mxu0
  %v614 = vadd.f32 %v504, %v613
  %v615 = vpop.f32.mrf.mxu0
  %v616 = vadd.f32 %v504, %v615
  %617 = vmatmul.bf16.gmra.mxu0 %v481
  %v618 = vpop.f32.mrf.mxu0
  %v619 = vadd.f32 %v504, %v618
  %v620 = vpop.f32.mrf.mxu0
  %v621 = vadd.f32 %v504, %v620
  %622 = vmatmul.bf16.gmra.mxu0 %v482
  %v623 = vpop.f32.mrf.mxu0
  %v624 = vadd.f32 %v504, %v623
  %v625 = vpop.f32.mrf.mxu0
  %v626 = vadd.f32 %v504, %v625
  %627 = vmatmul.bf16.gmra.mxu0 %v483
  %v628 = vpop.f32.mrf.mxu0
  %v629 = vadd.f32 %v504, %v628
  %v630 = vpop.f32.mrf.mxu0
  %v631 = vadd.f32 %v504, %v630
  %632 = vmatmul.bf16.gmra.mxu0 %v484
  %v633 = vpop.f32.mrf.mxu0
  %v634 = vadd.f32 %v504, %v633
  %v635 = vpop.f32.mrf.mxu0
  %v636 = vadd.f32 %v504, %v635
  %637 = vmatmul.bf16.gmra.mxu0 %v485
  %v638 = vpop.f32.mrf.mxu0
  %v639 = vadd.f32 %v504, %v638
  %v640 = vpop.f32.mrf.mxu0
  %v641 = vadd.f32 %v504, %v640
  %642 = vdwg.mxu0
  %643 = vst [vmem:[%s7] sm:$0xff] %v564
  %644 = vst [vmem:[%s7 + $0x8] sm:$0xff] %v566
  %645 = vst [vmem:[%s7 + $0x10] sm:$0xff] %v569
  %646 = vst [vmem:[%s7 + $0x18] sm:$0xff] %v571
  %647 = vst [vmem:[%s7 + $0x20] sm:$0xff] %v574
  %648 = vst [vmem:[%s7 + $0x28] sm:$0xff] %v576
  %649 = vst [vmem:[%s7 + $0x30] sm:$0xff] %v579
  %650 = vst [vmem:[%s7 + $0x38] sm:$0xff] %v581
  %651 = vst [vmem:[%s7 + $0x40] sm:$0xff] %v584
  %652 = vst [vmem:[%s7 + $0x48] sm:$0xff] %v586
  %653 = vst [vmem:[%s7 + $0x50] sm:$0xff] %v589
  %654 = vst [vmem:[%s7 + $0x58] sm:$0xff] %v591
  %655 = vst [vmem:[%s7 + $0x60] sm:$0xff] %v594
  %656 = vst [vmem:[%s7 + $0x68] sm:$0xff] %v596
  %657 = vst [vmem:[%s7 + $0x70] sm:$0xff] %v599
  %658 = vst [vmem:[%s7 + $0x78] sm:$0xff] %v601
  %659 = vst [vmem:[%s7 + $0x80] sm:$0xff] %v604
  %660 = vst [vmem:[%s7 + $0x88] sm:$0xff] %v606
  %661 = vst [vmem:[%s7 + $0x90] sm:$0xff] %v609
  %662 = vst [vmem:[%s7 + $0x98] sm:$0xff] %v611
  %663 = vst [vmem:[%s7 + $0xa0] sm:$0xff] %v614
  %664 = vst [vmem:[%s7 + $0xa8] sm:$0xff] %v616
  %665 = vst [vmem:[%s7 + $0xb0] sm:$0xff] %v619
  %666 = vst [vmem:[%s7 + $0xb8] sm:$0xff] %v621
  %667 = vst [vmem:[%s7 + $0xc0] sm:$0xff] %v624
  %668 = vst [vmem:[%s7 + $0xc8] sm:$0xff] %v626
  %669 = vst [vmem:[%s7 + $0xd0] sm:$0xff] %v629
  %670 = vst [vmem:[%s7 + $0xd8] sm:$0xff] %v631
  %671 = vst [vmem:[%s7 + $0xe0] sm:$0xff] %v634
  %672 = vst [vmem:[%s7 + $0xe8] sm:$0xff] %v636
  %673 = vst [vmem:[%s7 + $0xf0] sm:$0xff] %v639
  %674 = vst [vmem:[%s7 + $0xf8] sm:$0xff] %v641
  // Predicated region
  $region30: #{_mlp_forward_impl.1} parent=0 // pred_check
    _
  $region31: #{_mlp_forward_impl.1} parent=0 // pred_check_branch
    %676 = sbr.rel (0) target = $region33
  $region32: #{_mlp_forward_impl.1} parent=0 // pred_region
    _
  $region33: #{_mlp_forward_impl.1} parent=0 // pred_fallthru
    _
  // Predicated region
  $region34: #{_mlp_forward_impl.1} parent=0 // pred_check
    _
  $region35: #{_mlp_forward_impl.1} parent=0 // pred_check_branch
    %678 = sbr.rel (0) target = $region37
  $region36: #{_mlp_forward_impl.1} parent=0 // pred_region
    _
  $region37: #{_mlp_forward_impl.1} parent=0 // pred_fallthru
    _

</llo_original>
